<compile_context>
chip_gen: v6e
topology: v6e:2x2x1
jax: 0.10.0
libtpu: 0.0.40
codegen_flags: <defaults>
</compile_context>

<pallas_src>
import functools
import math

import jax
import jax.numpy as jnp
from jax.experimental import pallas as pl
from jax.experimental.pallas import tpu as pltpu


def _round_up(x, m):
    return ((x + m - 1) // m) * m


def _cdiv(a, b):
    return -(-a // b)


def _num_tensorcores():
    """Best-effort detection of TensorCores per chip (2 on v7x, else 1)."""
    try:
        kind = jax.devices()[0].device_kind.lower().replace(" ", "")
        if "v7" in kind or "tpu7" in kind:
            return 2
    except Exception:
        pass
    return 1


def _vmem_budget_bytes():
    """Per-generation VMEM budget for the kernel's operand/scratch footprint."""
    try:
        cap = int(pltpu.get_tpu_info().vmem_capacity_bytes)
    except Exception:
        cap = None
    if cap is None:
        return 40 * 1024 * 1024                       # safe everywhere (v7x = 64 MiB physical)
    if cap >= 100 * 1024 * 1024:                      # v5e / v6e: 128 MiB physical
        return 96 * 1024 * 1024
    return max(24 * 1024 * 1024, int(cap * 0.6))      # v7x: ~38 MiB of 64 MiB


def _select_tiles(N, C, O, in_itemsize, out_itemsize, budget, caps=None):
    """Pick (TM, TN, TK).

    Full-dim tiles (no padding, single step along that axis) are preferred whenever the
    dim fits under the cap; otherwise tiles are MXU/lane-friendly quanta. Caps shrink
    until the double-buffered footprint fits the VMEM budget.
    """
    m_quantum = 16 if in_itemsize == 2 else 8
    tm_cap, tn_cap, tk_cap = caps if caps is not None else (512, 1024, 4096)

    def tile_for(dim, quantum, cap):
        if dim <= cap:
            return dim                                # full dim: exempt from (8,128) rule
        n_tiles = _cdiv(dim, cap)
        return _round_up(_cdiv(dim, n_tiles), quantum)

    while True:
        TM = tile_for(N, m_quantum, tm_cap)
        TN = tile_for(O, 128, tn_cap)
        TK = tile_for(C, 128, tk_cap)
        grid_k = _cdiv(_round_up(C, TK), TK)
        fp = (2 * TM * TK * in_itemsize               # x tile, double buffered
              + 2 * TK * TN * in_itemsize             # weight tile, double buffered
              + 2 * TM * TN * out_itemsize)           # output tile, double buffered
        if grid_k > 1:
            fp += TM * TN * 4                         # f32 accumulator scratch
        if fp <= budget:
            return TM, TN, TK
        if tk_cap > 512:
            tk_cap //= 2
        elif tn_cap > 256:
            tn_cap //= 2
        elif tm_cap > 128:
            tm_cap //= 2
        else:
            return TM, TN, TK


def _conv1x1_kernel(*refs, use_relu, use_bn, multi_k):
    if use_bn:
        x_ref, w_ref, scale_ref, shift_ref, o_ref = refs[:5]
        scratch = refs[5:]
    else:
        x_ref, w_ref, o_ref = refs[:3]
        scale_ref = shift_ref = None
        scratch = refs[3:]

    def contract():
        # (TM, TK) @ (TK, TN). Operands are already bf16 (or f32) from the wrapper and
        # the weight is pre-transposed to (C, O), so this is the canonical MXU matmul
        # with no in-kernel cast or transpose; accumulation is f32.
        return jax.lax.dot_general(
            x_ref[...], w_ref[...],
            dimension_numbers=(((1,), (0,)), ((), ())),
            preferred_element_type=jnp.float32)

    def epilogue(y):
        if use_bn:
            y = y * scale_ref[...] + shift_ref[...]
        if use_relu:
            y = jnp.maximum(y, 0.0)
        return y.astype(o_ref.dtype)

    if not multi_k:
        # Single K step: no accumulator scratch, store straight to the output tile.
        o_ref[...] = epilogue(contract())
    else:
        acc_ref = scratch[0]

        @pl.when(pl.program_id(2) == 0)
        def _():
            acc_ref[...] = jnp.zeros_like(acc_ref)

        acc_ref[...] += contract()

        @pl.when(pl.program_id(2) == pl.num_programs(2) - 1)
        def _():
            o_ref[...] = epilogue(acc_ref[...])


def conv_forward(x_nchw, weight_oc, bn_scale=None, bn_shift=None, *,
                 relu=False, bn=False, compute_dtype=jnp.bfloat16,
                 _tile_caps=None):
    """Forward pass of the `conv` module.

    x_nchw:    (N, C, 1, 1)  NCHW input (forward squeezes dims 2,3 => requires H=W=1)
    weight_oc: (O, C)        Conv2d weight (kernel_size=1, bias=False), squeezed
    bn_scale:  (O,)          eval-time BN scale = gamma / sqrt(running_var + eps)
    bn_shift:  (O,)          eval-time BN shift = beta - running_mean * bn_scale
    returns:   (N, O)        matches x.squeeze(3).squeeze(2)

    compute_dtype: matmul operand dtype. bf16 by default (MXU-native, f32 accumulation);
                   pass jnp.float32 for full-precision operands.
    """
    N, C, H, W = x_nchw.shape
    assert H == 1 and W == 1, "module semantics require H=W=1 (forward squeezes dims 2,3)"
    O, Cw = weight_oc.shape
    assert Cw == C

    out_dtype = x_nchw.dtype
    in_itemsize = jnp.dtype(compute_dtype).itemsize
    out_itemsize = jnp.dtype(out_dtype).itemsize
    m_quantum = 16 if in_itemsize == 2 else 8

    budget = _vmem_budget_bytes()
    TM, TN, TK = _select_tiles(N, C, O, in_itemsize, out_itemsize, budget,
                               caps=_tile_caps)

    # v7x (2 TensorCores): ensure >= 2 "parallel" blocks so both cores get work.
    if _num_tensorcores() >= 2:
        gi = _cdiv(_round_up(N, TM), TM)
        gj = _cdiv(_round_up(O, TN), TN)
        if gi * gj == 1:
            if N >= 2 * m_quantum:
                TM = _round_up(_cdiv(N, 2), m_quantum)
            elif O >= 256:
                TN = _round_up(_cdiv(O, 2), 128)

    N_pad = _round_up(N, TM)
    O_pad = _round_up(O, TN)
    C_pad = _round_up(C, TK)
    grid_i, grid_j, grid_k = N_pad // TM, O_pad // TN, C_pad // TK
    multi_k = grid_k > 1

    # Cast (and transpose the weight to (C, O)) once in the wrapper so the kernel streams
    # bf16 with no per-tile cast/transpose; any padding fuses into the same copy.
    x2d = x_nchw.reshape(N, C).astype(compute_dtype)
    if (N_pad, C_pad) != (N, C):
        x2d = jnp.pad(x2d, ((0, N_pad - N), (0, C_pad - C)))
    w_ck = weight_oc.astype(compute_dtype).T                    # (C, O)
    if (C_pad, O_pad) != (C, O):
        w_ck = jnp.pad(w_ck, ((0, C_pad - C), (0, O_pad - O)))

    operands = [x2d, w_ck]
    if multi_k:
        grid = (grid_i, grid_j, grid_k)
        x_spec = pl.BlockSpec((TM, TK), lambda i, j, k: (i, k))
        w_spec = pl.BlockSpec((TK, TN), lambda i, j, k: (k, j))
        p_spec = pl.BlockSpec((1, TN), lambda i, j, k: (0, j))
        o_spec = pl.BlockSpec((TM, TN), lambda i, j, k: (i, j))
        scratch = [pltpu.VMEM((TM, TN), jnp.float32)]
        dim_sem = ("parallel", "parallel", "arbitrary")
    else:
        grid = (grid_i, grid_j)
        x_spec = pl.BlockSpec((TM, TK), lambda i, j: (i, 0))
        # When grid_j == 1 this index is constant => the whole weight is DMA'd exactly once
        # and stays VMEM-resident across the N tiles.
        w_spec = pl.BlockSpec((TK, TN), lambda i, j: (0, j))
        p_spec = pl.BlockSpec((1, TN), lambda i, j: (0, j))
        o_spec = pl.BlockSpec((TM, TN), lambda i, j: (i, j))
        scratch = []
        dim_sem = ("parallel", "parallel")

    in_specs = [x_spec, w_spec]
    if bn:
        # TODO(synk): training-mode batch statistics (mean/var over N,H,W) not modeled;
        # this is the eval-time affine form only.
        if bn_scale is None:
            bn_scale = jnp.ones((O,), jnp.float32)
        if bn_shift is None:
            bn_shift = jnp.zeros((O,), jnp.float32)
        scale = jnp.asarray(bn_scale, jnp.float32).reshape(1, O)
        shift = jnp.asarray(bn_shift, jnp.float32).reshape(1, O)
        if O_pad != O:
            scale = jnp.pad(scale, ((0, 0), (0, O_pad - O)))
            shift = jnp.pad(shift, ((0, 0), (0, O_pad - O)))
        in_specs += [p_spec, p_spec]
        operands += [scale, shift]

    # Advisory cost estimate with real operand widths and re-fetch counts.
    if multi_k:
        x_fetch, w_fetch = grid_j, grid_i
    else:
        x_fetch, w_fetch = 1, (grid_i if grid_j > 1 else 1)
    cost = pl.CostEstimate(
        flops=2 * N_pad * C_pad * O_pad,
        transcendentals=0,
        bytes_accessed=(x_fetch * N_pad * C_pad * in_itemsize
                        + w_fetch * C_pad * O_pad * in_itemsize
                        + N_pad * O_pad * out_itemsize),
    )
    cparams = pltpu.CompilerParams(
        dimension_semantics=dim_sem,
        vmem_limit_bytes=min(budget + (8 << 20), 128 << 20),
    )
    kernel = functools.partial(_conv1x1_kernel, use_relu=relu, use_bn=bn,
                               multi_k=multi_k)

    out = pl.pallas_call(
        kernel,
        out_shape=jax.ShapeDtypeStruct((N_pad, O_pad), out_dtype),
        grid_spec=pltpu.PrefetchScalarGridSpec(
            num_scalar_prefetch=0,
            grid=grid,
            in_specs=in_specs,
            out_specs=o_spec,
            scratch_shapes=scratch,
        ),
        compiler_params=cparams,
        cost_estimate=cost,
    )(*operands)

    return out[:N, :O]


def _reference(x_nchw, weight_oc, relu=False, bn=False, scale=None, shift=None):
    # Reference with bf16-rounded operands (matches the kernel compute dtype), f32 accum.
    N, C = x_nchw.shape[0], x_nchw.shape[1]
    xb = x_nchw.reshape(N, C).astype(jnp.bfloat16).astype(jnp.float32)
    wb = weight_oc.astype(jnp.bfloat16).astype(jnp.float32)
    y = xb @ wb.T
    if bn:
        y = y * scale[None, :] + shift[None, :]
    if relu:
        y = jnp.maximum(y, 0.0)
    return y


if __name__ == "__main__":
    key = jax.random.PRNGKey(0)
    k_x, k_w, k_x2, k_w2 = jax.random.split(key, 4)

    # --- Test 1: plain conv (no BN / ReLU), tiny shapes, single-block grid -------------
    N, C, O = 8, 32, 16
    x = jax.random.normal(k_x, (N, C, 1, 1), dtype=jnp.float32)
    # kaiming_normal_(mode='fan_out', nonlinearity='relu') for an (O, C, 1, 1) conv:
    # fan_out = O * kH * kW = O ; gain = sqrt(2)
    std = math.sqrt(2.0) / math.sqrt(O)
    w = std * jax.random.normal(k_w, (O, C), dtype=jnp.float32)

    out = jax.block_until_ready(conv_forward(x, w, relu=False, bn=False))
    ref = _reference(x, w)
    assert out.shape == (N, O)
    assert jnp.allclose(out, ref, atol=1e-2, rtol=1e-2)

    # --- Test 2: fused BN (eval affine) + ReLU; resident-weight single-K-step path -----
    N2, C2, O2 = 64, 640, 144
    x2 = jax.random.normal(k_x2, (N2, C2, 1, 1), dtype=jnp.float32)
    std2 = math.sqrt(2.0) / math.sqrt(O2)
    w2 = std2 * jax.random.normal(k_w2, (O2, C2), dtype=jnp.float32)
    bn_scale = jnp.ones((O2,), jnp.float32)     # BatchNorm2d kaiming init: weight=1, bias=0
    bn_shift = jnp.zeros((O2,), jnp.float32)

    out2 = jax.block_until_ready(
        conv_forward(x2, w2, bn_scale, bn_shift, relu=True, bn=True))
    ref2 = _reference(x2, w2, relu=True, bn=True, scale=bn_scale, shift=bn_shift)
    assert out2.shape == (N2, O2)
    assert jnp.allclose(out2, ref2, atol=1e-2, rtol=1e-2)

    # --- Test 3: force small tile caps to exercise the multi-K accumulator path --------
    out3 = jax.block_until_ready(
        conv_forward(x2, w2, bn_scale, bn_shift, relu=True, bn=True,
                     _tile_caps=(32, 128, 128)))
    assert out3.shape == (N2, O2)
    assert jnp.allclose(out3, ref2, atol=1e-2, rtol=1e-2)

    print("KERNEL_OK")
</pallas_src>

<mosaic_0001>
module attributes {stable_mosaic.version = 11 : i64} {
  func.func @_conv1x1_kernel(%arg0: i32, %arg1: i32, %arg2: memref<8x32xbf16, #tpu.memory_space<vmem>>, %arg3: memref<32x16xbf16, #tpu.memory_space<vmem>>, %arg4: memref<8x16xf32, #tpu.memory_space<vmem>>) attributes {dimension_semantics = [#tpu.dimension_semantics<parallel>, #tpu.dimension_semantics<parallel>], iteration_bounds = array<i64: 1, 1>, scalar_prefetch = 0 : i64, scratch_operands = 0 : i64, tpu.core_type = #tpu.core_type<tc>, window_params = [{transform_indices = @transform_0, window_bounds = array<i64: 8, 32>}, {transform_indices = @transform_1, window_bounds = array<i64: 32, 16>}, {transform_indices = @transform_2, window_bounds = array<i64: 8, 16>}]} {
    %c0 = arith.constant 0 : index
    %c0_0 = arith.constant 0 : index
    %0 = vector.load %arg2[%c0, %c0_0] : memref<8x32xbf16, #tpu.memory_space<vmem>>, vector<8x32xbf16>
    %c0_1 = arith.constant 0 : index
    %c0_2 = arith.constant 0 : index
    %1 = vector.load %arg3[%c0_1, %c0_2] : memref<32x16xbf16, #tpu.memory_space<vmem>>, vector<32x16xbf16>
    %cst = arith.constant dense<0.000000e+00> : vector<8x16xf32>
    %2 = tpu.matmul %0, %1, %cst {dimension_numbers = #tpu.dot_dimension_numbers<[1], [0], [0], [1], [0, 0, 1, 1], [], []>} : vector<8x32xbf16>, vector<32x16xbf16>, vector<8x16xf32> -> vector<8x16xf32>
    %c0_3 = arith.constant 0 : index
    %c0_4 = arith.constant 0 : index
    %3 = vector.load %arg4[%c0_3, %c0_4] : memref<8x16xf32, #tpu.memory_space<vmem>>, vector<8x16xf32>
    tpu.vector_store %arg4[%c0_3, %c0_4], %2 {strides = array<i32>} : memref<8x16xf32, #tpu.memory_space<vmem>>, vector<8x16xf32>,
    return
  }
  func.func @transform_0(%arg0: i32, %arg1: i32) -> (i32, i32) {
    %c0_i32 = arith.constant 0 : i32
    %c0_i32_0 = arith.constant 0 : i32
    return %arg0, %c0_i32 : i32, i32
  }
  func.func @transform_1(%arg0: i32, %arg1: i32) -> (i32, i32) {
    %c0_i32 = arith.constant 0 : i32
    %c0_i32_0 = arith.constant 0 : i32
    return %c0_i32, %arg1 : i32, i32
  }
  func.func @transform_2(%arg0: i32, %arg1: i32) -> (i32, i32) {
    %c0_i32 = arith.constant 0 : i32
    return %arg0, %arg1 : i32, i32
  }
}

</mosaic_0001>

<llo_original>
// kernel: tpu_custom_call.1
$region0: #{tpu_custom_call.1}
  #allocation0 [shape = 'u32[]', space=smem, size = 0x4, offset = 0x4, fixed_abs, tag = 'smem constant byte address 0x4 - core index']
  #allocation1 [shape = 'u32[144,128]{1,0:T(1,128)}', space=vmem, size = 0x12000, scoped, tag = 'internal scratch']
  %s0 = inlined_call_operand.vmem [shape: bf16[8,32], index: 0, kind: input, shape index: {}]
  %s1 = inlined_call_operand.vmem [shape: bf16[32,16], index: 1, kind: input, shape index: {}]
  %s2 = inlined_call_operand.hbm [shape: f32[8,16], index: 2, kind: output, shape index: {}]
  %s3 = sld [smem:[#allocation0]]
  $region18: #{tpu_custom_call.1} parent=0
    _
  %s5 = ssub.s32 1, %s3
  %s6 = scalar_select 0, %s5, %s3
  $region1: #{tpu_custom_call.1} parent=0
    #allocation2 [shape = 'u8[4096]{0}', space=vmem, size = 0x1000, scoped, tag = 'output window, operand 0, single buffered']
    #allocation3 [shape = 's32[1]{0}', space=sflag, size = 0x4, scoped, tag = 'scoped memory for tpu_custom_call.1']
    %7 = vsyncpa [#allocation3], 0
    // Predicated region
    $region2: #{tpu_custom_call.1} parent=1 // pred_check
      _
    $region3: #{tpu_custom_call.1} parent=1 // pred_check_branch
      %9 = sbr.rel (0) target = $region5
    $region4: #{tpu_custom_call.1} parent=1 // pred_region
      _
    $region5: #{tpu_custom_call.1} parent=1 // pred_fallthru
      _
    // Predicated region
    $region6: #{tpu_custom_call.1} parent=1 // pred_check
      _
    $region7: #{tpu_custom_call.1} parent=1 // pred_check_branch
      %11 = sbr.rel (0) target = $region9
    $region8: #{tpu_custom_call.1} parent=1 // pred_region
      _
    $region9: #{tpu_custom_call.1} parent=1 // pred_fallthru
      _
    %v13 = vld [vmem:[%s0] sm:$0xf]
    %v14 = vld [vmem:[%s1] sm:$0xf]
    %v15 = vld [vmem:[%s1 + $0x4] sm:$0xf]
    %v16 = vld [vmem:[%s1 + $0x8] sm:$0xf]
    %v17 = vld [vmem:[%s1 + $0xc] sm:$0xf]
    %v22 = vunpack.c.l.b16 %v14
    %v23 = vunpack.c.l.b16 %v15
    %v24 = vunpack.c.l.b16 %v16
    %v25 = vunpack.c.l.b16 %v17
    %v26 = vpack.c.b16 %v23, %v22
    %v27 = vpack.c.b16 %v25, %v24
    %vm30 = vcmask 261120
    %v32 = vsel %vm30, %v13, 0
    %34 = vmatprep.subr.bf16.mxu0 0
    %35 = vmatpush1.bf16.msra.mxu0 0
    %36 = vmatprep.subr.bf16.mxu0 0
    %37 = vmatpush1.bf16.msra.mxu0 0
    %38 = vmatprep.subr.bf16.mxu0 0
    %39 = vmatpush1.bf16.msra.mxu0 0
    %40 = vmatprep.subr.bf16.mxu0 0
    %41 = vmatpush1.bf16.msra.mxu0 0
    %42 = vmatprep.subr.bf16.mxu0 0
    %43 = vmatpush1.bf16.msra.mxu0 0
    %44 = vmatprep.subr.bf16.mxu0 0
    %45 = vmatpush1.bf16.msra.mxu0 0
    %46 = vmatprep.subr.bf16.mxu0 0
    %47 = vmatpush1.bf16.msra.mxu0 %v27
    %48 = vmatprep.subr.bf16.mxu0 0
    %49 = vmatpush1.bf16.msra.mxu0 %v26
    %50 = vmatprep.subr.bf16.mxu0 0
    %51 = vmatpush2.bf16.msra.mxu0 0
    %52 = vmatprep.subr.bf16.mxu0 0
    %53 = vmatpush2.bf16.msra.mxu0 0
    %54 = vmatprep.subr.bf16.mxu0 0
    %55 = vmatpush2.bf16.msra.mxu0 0
    %56 = vmatprep.subr.bf16.mxu0 0
    %57 = vmatpush2.bf16.msra.mxu0 0
    %58 = vmatprep.subr.bf16.mxu0 0
    %59 = vmatpush2.bf16.msra.mxu0 0
    %60 = vmatprep.subr.bf16.mxu0 0
    %61 = vmatpush2.bf16.msra.mxu0 0
    %62 = vmatprep.subr.bf16.mxu0 0
    %63 = vmatpush2.bf16.msra.mxu0 0
    %64 = vmatprep.subr.bf16.mxu0 0
    %65 = vmatpush2.bf16.msra.mxu0 0
    %66 = vmatprep.mubr.bf16.mxu0 0
    %67 = vmatmul.mubr.bf16.gmra.mxu0 %v32
    %v68 = vpop.f32.mrf.mxu0
    %v69 = vadd.f32 0.0, %v68
    %v70 = vpop.f32.mrf.mxu0
    %v71 = vpop.f32.mrf.mxu0
    %v72 = vpop.f32.mrf.mxu0
    %73 = vdwg.mxu0
    %vm74 = vcmask 130048
    %75 = vst.msk [vmem:[#allocation2] sm:$0xff] %vm74, %v69
    // Predicated region
    $region10: #{tpu_custom_call.1} parent=1 // pred_check
      _
    $region11: #{tpu_custom_call.1} parent=1 // pred_check_branch
      %77 = sbr.rel (0) target = $region13
    $region12: #{tpu_custom_call.1} parent=1 // pred_region
      %s79 = ssub.s32 128, 128
      %80 = vsyncadd [#allocation3], %s79
      %s82 = sshll.u32 [#allocation2], 4
      %s83 = int_to_ptr.vmem [resolvable:$true] %s82
      %85 = dma.vmem_to_hbm [thread:$0]  %s83, 128, %s2, [#allocation3]
    $region13: #{tpu_custom_call.1} parent=1 // pred_fallthru
      _
    // Predicated region
    $region14: #{tpu_custom_call.1} parent=1 // pred_check
      _
    $region15: #{tpu_custom_call.1} parent=1 // pred_check_branch
      %87 = sbr.rel (0) target = $region17
    $region16: #{tpu_custom_call.1} parent=1 // pred_region
      %88 = dma.done [#allocation3], 128
    $region17: #{tpu_custom_call.1} parent=1 // pred_fallthru
      _
    %89 = vsyncpa [#allocation3], 1

</llo_original>
